<compile_context>
chip_gen: v5e
topology: v5e:2x2
jax: 0.10.0
libtpu: 0.0.40
codegen_flags: <defaults>
</compile_context>

<pallas_src>
import functools
import math

import jax
import jax.numpy as jnp
from jax import lax
from jax.experimental import pallas as pl
from jax.experimental.pallas import tpu as pltpu

# Keep the pure-JAX reference matmuls at full f32 precision so the tolerance
# check is meaningful.
jax.config.update("jax_default_matmul_precision", "highest")


def _round_up(x, m):
    return ((x + m - 1) // m) * m


def _vmem_limit(buffer_bytes, headroom=4 << 20, lo=16 << 20, hi=64 << 20):
    # Explicit scoped-VMEM request (v5e default is only 16 MiB); capped at
    # 64 MiB so the same request is still legal on v7x.
    return int(min(max(buffer_bytes + headroom, lo), hi))


# ---------------------------------------------------------------------------
# Linear:  y = x @ W + b       (W stored as (in_features, out_features),
#                               i.e. the transpose of nn.Linear.weight)
# ---------------------------------------------------------------------------
def _linear_kernel(x_ref, w_ref, b_ref, o_ref):
    acc = jnp.dot(x_ref[...], w_ref[...], preferred_element_type=jnp.float32)
    o_ref[...] = (acc + b_ref[...]).astype(o_ref.dtype)


def linear(x2d, w, b, *, tm=256):
    """x2d: (N, d_in) -> (N, d_out).  Rows are padded (not asserted) to the tile."""
    n, d_in = x2d.shape
    d_out = w.shape[1]

    # Large row tile for MXU utilization; shrink for tiny inputs, keep /8.
    tm = min(tm, _round_up(n, 8))
    n_pad = _round_up(n, tm)
    if n_pad != n:
        x2d = jnp.pad(x2d, ((0, n_pad - n), (0, 0)))
    b2d = b.reshape(1, d_out)

    dsz = jnp.dtype(x2d.dtype).itemsize
    buf_bytes = 2 * (tm * d_in + tm * d_out + d_in * d_out + d_out) * dsz
    cost = pl.CostEstimate(
        flops=2 * n_pad * d_in * d_out,
        transcendentals=0,
        bytes_accessed=(n_pad * d_in + d_in * d_out + d_out + n_pad * d_out) * dsz,
    )

    out = pl.pallas_call(
        _linear_kernel,
        out_shape=jax.ShapeDtypeStruct((n_pad, d_out), x2d.dtype),
        grid_spec=pltpu.PrefetchScalarGridSpec(
            num_scalar_prefetch=0,
            grid=(n_pad // tm,),
            in_specs=[
                pl.BlockSpec((tm, d_in), lambda i: (i, 0)),       # activations
                pl.BlockSpec((d_in, d_out), lambda i: (0, 0)),    # weight (resident)
                pl.BlockSpec((1, d_out), lambda i: (0, 0)),       # bias
            ],
            out_specs=pl.BlockSpec((tm, d_out), lambda i: (i, 0)),
        ),
        compiler_params=pltpu.CompilerParams(
            dimension_semantics=("parallel",),
            vmem_limit_bytes=_vmem_limit(buf_bytes),
        ),
        cost_estimate=cost,
    )(x2d, w, b2d)
    return out[:n]


# ---------------------------------------------------------------------------
# Per-(batch, head) attention:  softmax(Qp @ Vp^T / sqrt(dk)  masked) @ Kp
# ---------------------------------------------------------------------------
def _attention_kernel(q_ref, k_ref, v_ref, mask_ref, o_ref, *, scale):
    q = q_ref[0, 0]        # (Sq, dk)
    kp = k_ref[0, 0]       # (Sk, dk)
    vp = v_ref[0, 0]       # (Sk, dk)
    m = mask_ref[0, 0]     # (Sq, Sk)

    # NOTE: module quirk — scores against the V projection.
    scores = lax.dot_general(
        q, vp,
        dimension_numbers=(((1,), (1,)), ((), ())),
        preferred_element_type=jnp.float32,
    ) * scale
    scores = jnp.where(m == 0, -1e9, scores)        # masked_fill(mask == 0, -1e9)

    # numerically-stable softmax over the last axis
    scores = scores - jnp.max(scores, axis=-1, keepdims=True)
    p = jnp.exp(scores)
    p = p / jnp.sum(p, axis=-1, keepdims=True)
    # dropout(p): identity at inference

    # NOTE: module quirk — weighted sum over the K projection.
    out = jnp.dot(p.astype(kp.dtype), kp, preferred_element_type=jnp.float32)
    o_ref[0, 0] = out.astype(o_ref.dtype)


def multi_head_attention(q, k, v, mask, params, *, h):
    """q,k,v: (B, S, d_model). mask: broadcastable to (B, 1, Sq, Sk) or None."""
    wq, bq, wk, bk, wv, bv, wo, bo = params
    B, Sq, d_model = q.shape
    Sk = k.shape[1]
    assert d_model % h == 0, "d_model is not divisible by h"
    dk = d_model // h

    # Projections (Pallas linear kernel), then split heads.
    Qp = linear(q.reshape(-1, d_model), wq, bq).reshape(B, Sq, h, dk).transpose(0, 2, 1, 3)
    Kp = linear(k.reshape(-1, d_model), wk, bk).reshape(B, Sk, h, dk).transpose(0, 2, 1, 3)
    Vp = linear(v.reshape(-1, d_model), wv, bv).reshape(B, Sk, h, dk).transpose(0, 2, 1, 3)

    if mask is None:
        mask4 = jnp.ones((B, 1, Sq, Sk), jnp.float32)
    else:
        mask4 = jnp.broadcast_to(jnp.asarray(mask, jnp.float32), (B, 1, Sq, Sk))

    dsz = 4
    buf_bytes = 2 * (Sq * dk + 2 * Sk * dk + Sq * Sk + Sq * dk) * dsz + Sq * Sk * dsz
    cost = pl.CostEstimate(
        flops=B * h * (4 * Sq * Sk * dk + 6 * Sq * Sk),
        transcendentals=B * h * Sq * Sk,
        bytes_accessed=(3 * B * h * Sk * dk + B * Sq * Sk + B * h * Sq * dk) * dsz,
    )

    attn = pl.pallas_call(
        functools.partial(_attention_kernel, scale=1.0 / math.sqrt(dk)),
        out_shape=jax.ShapeDtypeStruct((B, h, Sq, dk), q.dtype),
        grid_spec=pltpu.PrefetchScalarGridSpec(
            num_scalar_prefetch=0,
            grid=(B, h),
            in_specs=[
                pl.BlockSpec((1, 1, Sq, dk), lambda b, hh: (b, hh, 0, 0)),  # Qp
                pl.BlockSpec((1, 1, Sk, dk), lambda b, hh: (b, hh, 0, 0)),  # Kp
                pl.BlockSpec((1, 1, Sk, dk), lambda b, hh: (b, hh, 0, 0)),  # Vp
                pl.BlockSpec((1, 1, Sq, Sk), lambda b, hh: (b, 0, 0, 0)),   # mask
            ],
            out_specs=pl.BlockSpec((1, 1, Sq, dk), lambda b, hh: (b, hh, 0, 0)),
        ),
        compiler_params=pltpu.CompilerParams(
            dimension_semantics=("parallel", "parallel"),
            vmem_limit_bytes=_vmem_limit(buf_bytes),
        ),
        cost_estimate=cost,
    )(Qp, Kp, Vp, mask4)

    # merge heads, then output projection
    ctx = attn.transpose(0, 2, 1, 3).reshape(B * Sq, d_model)
    out = linear(ctx, wo, bo).reshape(B, Sq, d_model)
    return out


# ---------------------------------------------------------------------------
# Pure-JAX reference that mirrors the PyTorch forward exactly.
# ---------------------------------------------------------------------------
def reference_mha(q, k, v, mask, params, *, h):
    wq, bq, wk, bk, wv, bv, wo, bo = params
    B, Sq, d_model = q.shape
    Sk = k.shape[1]
    dk = d_model // h
    Qp = (q @ wq + bq).reshape(B, Sq, h, dk).transpose(0, 2, 1, 3)
    Kp = (k @ wk + bk).reshape(B, Sk, h, dk).transpose(0, 2, 1, 3)
    Vp = (v @ wv + bv).reshape(B, Sk, h, dk).transpose(0, 2, 1, 3)
    scores = jnp.einsum("bhqd,bhkd->bhqk", Qp, Vp) / math.sqrt(dk)   # module quirk
    if mask is not None:
        m = jnp.broadcast_to(jnp.asarray(mask, jnp.float32), (B, 1, Sq, Sk))
        scores = jnp.where(m == 0, -1e9, scores)
    p = jax.nn.softmax(scores, axis=-1)
    x = jnp.einsum("bhqk,bhkd->bhqd", p, Kp)                          # module quirk
    x = x.transpose(0, 2, 1, 3).reshape(B, Sq, d_model)
    return x @ wo + bo


if __name__ == "__main__":
    # Small deterministic setup: batch=2, seq=16, d_model=128 (lane-dense), h=8.
    batch, seq, d_model, h = 2, 16, 128, 8

    key = jax.random.PRNGKey(0)
    (kq, kk, kv,
     kwq, kbq, kwk, kbk, kwv, kbv, kwo, kbo) = jax.random.split(key, 11)

    q = jax.random.normal(kq, (batch, seq, d_model), jnp.float32)
    k = jax.random.normal(kk, (batch, seq, d_model), jnp.float32)
    v = jax.random.normal(kv, (batch, seq, d_model), jnp.float32)

    # nn.Linear-style init, weights stored as (in_features, out_features).
    lim = 1.0 / math.sqrt(d_model)
    def init_w(kk_):
        return jax.random.uniform(kk_, (d_model, d_model), jnp.float32, -lim, lim)
    def init_b(kk_):
        return jax.random.uniform(kk_, (d_model,), jnp.float32, -lim, lim)

    params = (init_w(kwq), init_b(kbq),
              init_w(kwk), init_b(kbk),
              init_w(kwv), init_b(kbv),
              init_w(kwo), init_b(kbo))

    # Causal mask, broadcast over batch and heads (like typical PyTorch usage).
    mask = jnp.tril(jnp.ones((1, 1, seq, seq), jnp.float32))

    out = multi_head_attention(q, k, v, mask, params, h=h)
    out = jax.block_until_ready(out)

    ref = reference_mha(q, k, v, mask, params, h=h)
    assert out.shape == (batch, seq, d_model)
    max_diff = float(jnp.max(jnp.abs(out - ref)))
    assert jnp.allclose(out, ref, atol=2e-2, rtol=2e-2), f"max diff {max_diff}"

    print("KERNEL_OK")
</pallas_src>

<mosaic_0001>
module attributes {stable_mosaic.version = 11 : i64} {
  func.func @_linear_kernel(%arg0: i32, %arg1: memref<32x128xf32, #tpu.memory_space<vmem>>, %arg2: memref<128x128xf32, #tpu.memory_space<vmem>>, %arg3: memref<1x128xf32, #tpu.memory_space<vmem>>, %arg4: memref<32x128xf32, #tpu.memory_space<vmem>>) attributes {dimension_semantics = [#tpu.dimension_semantics<parallel>], iteration_bounds = array<i64: 1>, scalar_prefetch = 0 : i64, scratch_operands = 0 : i64, tpu.core_type = #tpu.core_type<tc>, window_params = [{transform_indices = @transform_0, window_bounds = array<i64: 32, 128>}, {pipeline_mode = #tpu.pipeline_mode<synchronous>, transform_indices = @transform_1, window_bounds = array<i64: 128, 128>}, {pipeline_mode = #tpu.pipeline_mode<synchronous>, transform_indices = @transform_2, window_bounds = array<i64: 1, 128>}, {transform_indices = @transform_3, window_bounds = array<i64: 32, 128>}]} {
    %c0 = arith.constant 0 : index
    %c0_0 = arith.constant 0 : index
    %0 = vector.load %arg1[%c0, %c0_0] : memref<32x128xf32, #tpu.memory_space<vmem>>, vector<32x128xf32>
    %c0_1 = arith.constant 0 : index
    %c0_2 = arith.constant 0 : index
    %1 = vector.load %arg2[%c0_1, %c0_2] : memref<128x128xf32, #tpu.memory_space<vmem>>, vector<128x128xf32>
    %cst = arith.constant dense<0.000000e+00> : vector<32x128xf32>
    %2 = tpu.matmul %0, %1, %cst {dimension_numbers = #tpu.dot_dimension_numbers<[1], [0], [0], [1], [0, 0, 1, 1], [], []>, precision = #tpu.contract_precision<fp32>} : vector<32x128xf32>, vector<128x128xf32>, vector<32x128xf32> -> vector<32x128xf32>
    %c0_3 = arith.constant 0 : index
    %c0_4 = arith.constant 0 : index
    %3 = vector.load %arg3[%c0_3, %c0_4] : memref<1x128xf32, #tpu.memory_space<vmem>>, vector<1x128xf32>
    %4 = vector.broadcast %3 : vector<1x128xf32> to vector<32x128xf32>
    %5 = arith.addf %2, %4 : vector<32x128xf32>
    %c0_5 = arith.constant 0 : index
    %c0_6 = arith.constant 0 : index
    %6 = vector.load %arg4[%c0_5, %c0_6] : memref<32x128xf32, #tpu.memory_space<vmem>>, vector<32x128xf32>
    tpu.vector_store %arg4[%c0_5, %c0_6], %5 {strides = array<i32>} : memref<32x128xf32, #tpu.memory_space<vmem>>, vector<32x128xf32>,
    return
  }
  func.func @transform_0(%arg0: i32) -> (i32, i32) {
    %c0_i32 = arith.constant 0 : i32
    %c0_i32_0 = arith.constant 0 : i32
    return %arg0, %c0_i32 : i32, i32
  }
  func.func @transform_1(%arg0: i32) -> (i32, i32) {
    %c0_i32 = arith.constant 0 : i32
    %c0_i32_0 = arith.constant 0 : i32
    %c0_i32_1 = arith.constant 0 : i32
    return %c0_i32, %c0_i32_0 : i32, i32
  }
  func.func @transform_2(%arg0: i32) -> (i32, i32) {
    %c0_i32 = arith.constant 0 : i32
    %c0_i32_0 = arith.constant 0 : i32
    %c0_i32_1 = arith.constant 0 : i32
    return %c0_i32, %c0_i32_0 : i32, i32
  }
  func.func @transform_3(%arg0: i32) -> (i32, i32) {
    %c0_i32 = arith.constant 0 : i32
    %c0_i32_0 = arith.constant 0 : i32
    return %arg0, %c0_i32 : i32, i32
  }
}

</mosaic_0001>

<llo_original>
// kernel: tpu_custom_call.1
$region0: #{tpu_custom_call.1}
  #allocation0 [shape = 'u32[]', space=smem, size = 0x4, offset = 0x4, fixed_abs, tag = 'smem constant byte address 0x4 - core index']
  #allocation1 [shape = 'u32[72,128]{1,0:T(1,128)}', space=vmem, size = 0x9000, scoped, tag = 'internal scratch']
  %s0 = inlined_call_operand.hbm [shape: f32[32,128], index: 0, kind: input, shape index: {}]
  %s1 = inlined_call_operand.hbm [shape: f32[128,128], index: 1, kind: input, shape index: {}]
  %s2 = inlined_call_operand.vmem [shape: f32[1,128], index: 2, kind: input, shape index: {}]
  %s3 = inlined_call_operand.hbm [shape: f32[32,128], index: 3, kind: output, shape index: {}]
  %s4 = sld [smem:[#allocation0]]
  $region30: #{tpu_custom_call.1} parent=0
    _
  %s6 = ssub.s32 1, %s4
  %s7 = scalar_select 0, %s6, %s4
  $region1: #{tpu_custom_call.1} parent=0
    #allocation2 [shape = 'u8[16384]{0}', space=vmem, size = 0x4000, scoped, tag = 'input window, operand 0, single buffered']
    #allocation3 [shape = 's32[1]{0}', space=sflag, size = 0x4, scoped, tag = 'scoped memory for tpu_custom_call.1']
    #allocation4 [shape = 's32[1]{0}', space=sflag, size = 0x4, scoped, tag = 'scoped memory for tpu_custom_call.1']
    #allocation5 [shape = 'u8[65536]{0}', space=vmem, size = 0x10000, scoped, tag = 'input window, operand 1, single buffered']
    #allocation6 [shape = 's32[1]{0}', space=sflag, size = 0x4, scoped, tag = 'scoped memory for tpu_custom_call.1']
    #allocation7 [shape = 'u8[16384]{0}', space=vmem, size = 0x4000, scoped, tag = 'output window, operand 0, single buffered']
    %8 = vsyncpa [#allocation3], 0
    %9 = vsyncpa [#allocation6], 0
    %10 = vsyncpa [#allocation4], 0
    // Predicated region
    $region2: #{tpu_custom_call.1} parent=1 // pred_check
      _
    $region3: #{tpu_custom_call.1} parent=1 // pred_check_branch
      %12 = sbr.rel (0) target = $region5
    $region4: #{tpu_custom_call.1} parent=1 // pred_region
      %14 = vsyncadd [#allocation3], 0
      %s15 = sshll.u32 %s0, 4
      %s16 = int_to_ptr.hbm [resolvable:$true] %s15
      %s17 = sshll.u32 [#allocation2], 4
      %s18 = int_to_ptr.vmem [resolvable:$true] %s17
      %23 = dma.hbm_to_vmem [thread:$0]  %s16, 512, %s18, [#allocation3], 128, 128, 8
    $region5: #{tpu_custom_call.1} parent=1 // pred_fallthru
      _
    // Predicated region
    $region6: #{tpu_custom_call.1} parent=1 // pred_check
      _
    $region7: #{tpu_custom_call.1} parent=1 // pred_check_branch
      %25 = sbr.rel (0) target = $region9
    $region8: #{tpu_custom_call.1} parent=1 // pred_region
      %27 = vsyncadd [#allocation6], 0
      %s28 = sshll.u32 %s1, 4
      %s29 = int_to_ptr.hbm [resolvable:$true] %s28
      %s30 = sshll.u32 [#allocation5], 4
      %s31 = int_to_ptr.vmem [resolvable:$true] %s30
      %36 = dma.hbm_to_vmem [thread:$0]  %s29, 2048, %s31, [#allocation6], 128, 128, 8
    $region9: #{tpu_custom_call.1} parent=1 // pred_fallthru
      _
    // Predicated region
    $region10: #{tpu_custom_call.1} parent=1 // pred_check
      _
    $region11: #{tpu_custom_call.1} parent=1 // pred_check_branch
      %38 = sbr.rel (0) target = $region13
    $region12: #{tpu_custom_call.1} parent=1 // pred_region
      _
    $region13: #{tpu_custom_call.1} parent=1 // pred_fallthru
      _
    // Predicated region
    $region14: #{tpu_custom_call.1} parent=1 // pred_check
      _
    $region15: #{tpu_custom_call.1} parent=1 // pred_check_branch
      %40 = sbr.rel (0) target = $region17
    $region16: #{tpu_custom_call.1} parent=1 // pred_region
      %42 = dma.done [#allocation3], 512
    $region17: #{tpu_custom_call.1} parent=1 // pred_fallthru
      _
    // Predicated region
    $region18: #{tpu_custom_call.1} parent=1 // pred_check
      _
    $region19: #{tpu_custom_call.1} parent=1 // pred_check_branch
      %44 = sbr.rel (0) target = $region21
    $region20: #{tpu_custom_call.1} parent=1 // pred_region
      %46 = dma.done [#allocation6], 2048
    $region21: #{tpu_custom_call.1} parent=1 // pred_fallthru
      _
    %v47 = vld [vmem:[#allocation2] sm:$0xff]
    %v48 = vld [vmem:[#allocation2 + $0x8] sm:$0xff]
    %v49 = vld [vmem:[#allocation2 + $0x10] sm:$0xff]
    %v50 = vld [vmem:[#allocation2 + $0x18] sm:$0xff]
    %v51 = vld [vmem:[#allocation5] sm:$0xff]
    %v52 = vld [vmem:[#allocation5 + $0x8] sm:$0xff]
    %v53 = vld [vmem:[#allocation5 + $0x10] sm:$0xff]
    %v54 = vld [vmem:[#allocation5 + $0x18] sm:$0xff]
    %v55 = vld [vmem:[#allocation5 + $0x20] sm:$0xff]
    %v56 = vld [vmem:[#allocation5 + $0x28] sm:$0xff]
    %v57 = vld [vmem:[#allocation5 + $0x30] sm:$0xff]
    %v58 = vld [vmem:[#allocation5 + $0x38] sm:$0xff]
    %v59 = vld [vmem:[#allocation5 + $0x40] sm:$0xff]
    %v60 = vld [vmem:[#allocation5 + $0x48] sm:$0xff]
    %v61 = vld [vmem:[#allocation5 + $0x50] sm:$0xff]
    %v62 = vld [vmem:[#allocation5 + $0x58] sm:$0xff]
    %v63 = vld [vmem:[#allocation5 + $0x60] sm:$0xff]
    %v64 = vld [vmem:[#allocation5 + $0x68] sm:$0xff]
    %v65 = vld [vmem:[#allocation5 + $0x70] sm:$0xff]
    %v66 = vld [vmem:[#allocation5 + $0x78] sm:$0xff]
    %v67 = vld [vmem:[%s2] sm:$0x1]
    %v69 = vperm.slane %v67, 0
    %v71 = vand.u32 %v66, 4294901760
    %72 = vmatpush.msra.mxu0 %v71
    %v73 = vand.u32 %v65, 4294901760
    %74 = vmatpush.msra.mxu0 %v73
    %v75 = vand.u32 %v64, 4294901760
    %76 = vmatpush.msra.mxu0 %v75
    %v77 = vand.u32 %v63, 4294901760
    %78 = vmatpush.msra.mxu0 %v77
    %v79 = vand.u32 %v62, 4294901760
    %80 = vmatpush.msra.mxu0 %v79
    %v81 = vand.u32 %v61, 4294901760
    %82 = vmatpush.msra.mxu0 %v81
    %v83 = vand.u32 %v60, 4294901760
    %84 = vmatpush.msra.mxu0 %v83
    %v85 = vand.u32 %v59, 4294901760
    %86 = vmatpush.msra.mxu0 %v85
    %v87 = vand.u32 %v58, 4294901760
    %88 = vmatpush.msra.mxu0 %v87
    %v89 = vand.u32 %v57, 4294901760
    %90 = vmatpush.msra.mxu0 %v89
    %v91 = vand.u32 %v56, 4294901760
    %92 = vmatpush.msra.mxu0 %v91
    %v93 = vand.u32 %v55, 4294901760
    %94 = vmatpush.msra.mxu0 %v93
    %v95 = vand.u32 %v54, 4294901760
    %96 = vmatpush.msra.mxu0 %v95
    %v97 = vand.u32 %v53, 4294901760
    %98 = vmatpush.msra.mxu0 %v97
    %v99 = vand.u32 %v52, 4294901760
    %100 = vmatpush.msra.mxu0 %v99
    %v101 = vand.u32 %v51, 4294901760
    %102 = vmatpush.msra.mxu0 %v101
    %v103 = vand.u32 %v47, 4294901760
    %v104 = vsub.f32 %v47, %v103
    %v105 = vand.u32 %v104, 4294901760
    %v106 = vsub.f32 %v104, %v105
    %v107 = vand.u32 %v106, 4294901760
    %108 = vmatmul.f32.gmra.mxu0 %v107
    %v109 = vpop.f32.mrf.mxu0
    %v110 = vadd.f32 %v69, %v109
    %v111 = vand.u32 %v48, 4294901760
    %v112 = vsub.f32 %v48, %v111
    %v113 = vand.u32 %v112, 4294901760
    %v114 = vsub.f32 %v112, %v113
    %v115 = vand.u32 %v114, 4294901760
    %116 = vmatmul.f32.gmra.mxu0 %v115
    %v117 = vpop.f32.mrf.mxu0
    %v118 = vadd.f32 %v69, %v117
    %v119 = vand.u32 %v49, 4294901760
    %v120 = vsub.f32 %v49, %v119
    %v121 = vand.u32 %v120, 4294901760
    %v122 = vsub.f32 %v120, %v121
    %v123 = vand.u32 %v122, 4294901760
    %124 = vmatmul.f32.gmra.mxu0 %v123
    %v125 = vpop.f32.mrf.mxu0
    %v126 = vadd.f32 %v69, %v125
    %v127 = vand.u32 %v50, 4294901760
    %v128 = vsub.f32 %v50, %v127
    %v129 = vand.u32 %v128, 4294901760
    %v130 = vsub.f32 %v128, %v129
    %v131 = vand.u32 %v130, 4294901760
    %132 = vmatmul.f32.gmra.mxu0 %v131
    %v133 = vpop.f32.mrf.mxu0
    %v134 = vadd.f32 %v69, %v133
    %135 = vdwg.mxu0
    %v136 = vand.u32 %v66, 4294901760
    %v137 = vsub.f32 %v66, %v136
    %v138 = vand.u32 %v137, 4294901760
    %v139 = vsub.f32 %v137, %v138
    %v140 = vand.u32 %v139, 4294901760
    %141 = vmatpush.msra.mxu0 %v140
    %v142 = vand.u32 %v65, 4294901760
    %v143 = vsub.f32 %v65, %v142
    %v144 = vand.u32 %v143, 4294901760
    %v145 = vsub.f32 %v143, %v144
    %v146 = vand.u32 %v145, 4294901760
    %147 = vmatpush.msra.mxu0 %v146
    %v148 = vand.u32 %v64, 4294901760
    %v149 = vsub.f32 %v64, %v148
    %v150 = vand.u32 %v149, 4294901760
    %v151 = vsub.f32 %v149, %v150
    %v152 = vand.u32 %v151, 4294901760
    %153 = vmatpush.msra.mxu0 %v152
    %v154 = vand.u32 %v63, 4294901760
    %v155 = vsub.f32 %v63, %v154
    %v156 = vand.u32 %v155, 4294901760
    %v157 = vsub.f32 %v155, %v156
    %v158 = vand.u32 %v157, 4294901760
    %159 = vmatpush.msra.mxu0 %v158
    %v160 = vand.u32 %v62, 4294901760
    %v161 = vsub.f32 %v62, %v160
    %v162 = vand.u32 %v161, 4294901760
    %v163 = vsub.f32 %v161, %v162
    %v164 = vand.u32 %v163, 4294901760
    %165 = vmatpush.msra.mxu0 %v164
    %v166 = vand.u32 %v61, 4294901760
    %v167 = vsub.f32 %v61, %v166
    %v168 = vand.u32 %v167, 4294901760
    %v169 = vsub.f32 %v167, %v168
    %v170 = vand.u32 %v169, 4294901760
    %171 = vmatpush.msra.mxu0 %v170
    %v172 = vand.u32 %v60, 4294901760
    %v173 = vsub.f32 %v60, %v172
    %v174 = vand.u32 %v173, 4294901760
    %v175 = vsub.f32 %v173, %v174
    %v176 = vand.u32 %v175, 4294901760
    %177 = vmatpush.msra.mxu0 %v176
    %v178 = vand.u32 %v59, 4294901760
    %v179 = vsub.f32 %v59, %v178
    %v180 = vand.u32 %v179, 4294901760
    %v181 = vsub.f32 %v179, %v180
    %v182 = vand.u32 %v181, 4294901760
    %183 = vmatpush.msra.mxu0 %v182
    %v184 = vand.u32 %v58, 4294901760
    %v185 = vsub.f32 %v58, %v184
    %v186 = vand.u32 %v185, 4294901760
    %v187 = vsub.f32 %v185, %v186
    %v188 = vand.u32 %v187, 4294901760
    %189 = vmatpush.msra.mxu0 %v188
    %v190 = vand.u32 %v57, 4294901760
    %v191 = vsub.f32 %v57, %v190
    %v192 = vand.u32 %v191, 4294901760
    %v193 = vsub.f32 %v191, %v192
    %v194 = vand.u32 %v193, 4294901760
    %195 = vmatpush.msra.mxu0 %v194
    %v196 = vand.u32 %v56, 4294901760
    %v197 = vsub.f32 %v56, %v196
    %v198 = vand.u32 %v197, 4294901760
    %v199 = vsub.f32 %v197, %v198
    %v200 = vand.u32 %v199, 4294901760
    %201 = vmatpush.msra.mxu0 %v200
    %v202 = vand.u32 %v55, 4294901760
    %v203 = vsub.f32 %v55, %v202
    %v204 = vand.u32 %v203, 4294901760
    %v205 = vsub.f32 %v203, %v204
    %v206 = vand.u32 %v205, 4294901760
    %207 = vmatpush.msra.mxu0 %v206
    %v208 = vand.u32 %v54, 4294901760
    %v209 = vsub.f32 %v54, %v208
    %v210 = vand.u32 %v209, 4294901760
    %v211 = vsub.f32 %v209, %v210
    %v212 = vand.u32 %v211, 4294901760
    %213 = vmatpush.msra.mxu0 %v212
    %v214 = vand.u32 %v53, 4294901760
    %v215 = vsub.f32 %v53, %v214
    %v216 = vand.u32 %v215, 4294901760
    %v217 = vsub.f32 %v215, %v216
    %v218 = vand.u32 %v217, 4294901760
    %219 = vmatpush.msra.mxu0 %v218
    %v220 = vand.u32 %v52, 4294901760
    %v221 = vsub.f32 %v52, %v220
    %v222 = vand.u32 %v221, 4294901760
    %v223 = vsub.f32 %v221, %v222
    %v224 = vand.u32 %v223, 4294901760
    %225 = vmatpush.msra.mxu0 %v224
    %v226 = vand.u32 %v51, 4294901760
    %v227 = vsub.f32 %v51, %v226
    %v228 = vand.u32 %v227, 4294901760
    %v229 = vsub.f32 %v227, %v228
    %v230 = vand.u32 %v229, 4294901760
    %231 = vmatpush.msra.mxu0 %v230
    %v232 = vand.u32 %v47, 4294901760
    %233 = vmatmul.f32.gmra.mxu0 %v232
    %v234 = vpop.f32.mrf.mxu0
    %v235 = vadd.f32 %v110, %v234
    %v236 = vand.u32 %v48, 4294901760
    %237 = vmatmul.f32.gmra.mxu0 %v236
    %v238 = vpop.f32.mrf.mxu0
    %v239 = vadd.f32 %v118, %v238
    %v240 = vand.u32 %v49, 4294901760
    %241 = vmatmul.f32.gmra.mxu0 %v240
    %v242 = vpop.f32.mrf.mxu0
    %v243 = vadd.f32 %v126, %v242
    %v244 = vand.u32 %v50, 4294901760
    %245 = vmatmul.f32.gmra.mxu0 %v244
    %v246 = vpop.f32.mrf.mxu0
    %v247 = vadd.f32 %v134, %v246
    %248 = vdwg.mxu0
    %v249 = vand.u32 %v66, 4294901760
    %v250 = vsub.f32 %v66, %v249
    %251 = vmatpush.msra.mxu0 %v250
    %v252 = vand.u32 %v65, 4294901760
    %v253 = vsub.f32 %v65, %v252
    %254 = vmatpush.msra.mxu0 %v253
    %v255 = vand.u32 %v64, 4294901760
    %v256 = vsub.f32 %v64, %v255
    %257 = vmatpush.msra.mxu0 %v256
    %v258 = vand.u32 %v63, 4294901760
    %v259 = vsub.f32 %v63, %v258
    %260 = vmatpush.msra.mxu0 %v259
    %v261 = vand.u32 %v62, 4294901760
    %v262 = vsub.f32 %v62, %v261
    %263 = vmatpush.msra.mxu0 %v262
    %v264 = vand.u32 %v61, 4294901760
    %v265 = vsub.f32 %v61, %v264
    %266 = vmatpush.msra.mxu0 %v265
    %v267 = vand.u32 %v60, 4294901760
    %v268 = vsub.f32 %v60, %v267
    %269 = vmatpush.msra.mxu0 %v268
    %v270 = vand.u32 %v59, 4294901760
    %v271 = vsub.f32 %v59, %v270
    %272 = vmatpush.msra.mxu0 %v271
    %v273 = vand.u32 %v58, 4294901760
    %v274 = vsub.f32 %v58, %v273
    %275 = vmatpush.msra.mxu0 %v274
    %v276 = vand.u32 %v57, 4294901760
    %v277 = vsub.f32 %v57, %v276
    %278 = vmatpush.msra.mxu0 %v277
    %v279 = vand.u32 %v56, 4294901760
    %v280 = vsub.f32 %v56, %v279
    %281 = vmatpush.msra.mxu0 %v280
    %v282 = vand.u32 %v55, 4294901760
    %v283 = vsub.f32 %v55, %v282
    %284 = vmatpush.msra.mxu0 %v283
    %v285 = vand.u32 %v54, 4294901760
    %v286 = vsub.f32 %v54, %v285
    %287 = vmatpush.msra.mxu0 %v286
    %v288 = vand.u32 %v53, 4294901760
    %v289 = vsub.f32 %v53, %v288
    %290 = vmatpush.msra.mxu0 %v289
    %v291 = vand.u32 %v52, 4294901760
    %v292 = vsub.f32 %v52, %v291
    %293 = vmatpush.msra.mxu0 %v292
    %v294 = vand.u32 %v51, 4294901760
    %v295 = vsub.f32 %v51, %v294
    %296 = vmatpush.msra.mxu0 %v295
    %v297 = vand.u32 %v47, 4294901760
    %v298 = vsub.f32 %v47, %v297
    %299 = vmatmul.f32.gmra.mxu0 %v298
    %v300 = vpop.f32.mrf.mxu0
    %v301 = vadd.f32 %v235, %v300
    %v302 = vand.u32 %v48, 4294901760
    %v303 = vsub.f32 %v48, %v302
    %304 = vmatmul.f32.gmra.mxu0 %v303
    %v305 = vpop.f32.mrf.mxu0
    %v306 = vadd.f32 %v239, %v305
    %v307 = vand.u32 %v49, 4294901760
    %v308 = vsub.f32 %v49, %v307
    %309 = vmatmul.f32.gmra.mxu0 %v308
    %v310 = vpop.f32.mrf.mxu0
    %v311 = vadd.f32 %v243, %v310
    %v312 = vand.u32 %v50, 4294901760
    %v313 = vsub.f32 %v50, %v312
    %314 = vmatmul.f32.gmra.mxu0 %v313
    %v315 = vpop.f32.mrf.mxu0
    %v316 = vadd.f32 %v247, %v315
    %317 = vdwg.mxu0
    %v318 = vand.u32 %v66, 4294901760
    %319 = vmatpush.msra.mxu0 %v318
    %v320 = vand.u32 %v65, 4294901760
    %321 = vmatpush.msra.mxu0 %v320
    %v322 = vand.u32 %v64, 4294901760
    %323 = vmatpush.msra.mxu0 %v322
    %v324 = vand.u32 %v63, 4294901760
    %325 = vmatpush.msra.mxu0 %v324
    %v326 = vand.u32 %v62, 4294901760
    %327 = vmatpush.msra.mxu0 %v326
    %v328 = vand.u32 %v61, 4294901760
    %329 = vmatpush.msra.mxu0 %v328
    %v330 = vand.u32 %v60, 4294901760
    %331 = vmatpush.msra.mxu0 %v330
    %v332 = vand.u32 %v59, 4294901760
    %333 = vmatpush.msra.mxu0 %v332
    %v334 = vand.u32 %v58, 4294901760
    %335 = vmatpush.msra.mxu0 %v334
    %v336 = vand.u32 %v57, 4294901760
    %337 = vmatpush.msra.mxu0 %v336
    %v338 = vand.u32 %v56, 4294901760
    %339 = vmatpush.msra.mxu0 %v338
    %v340 = vand.u32 %v55, 4294901760
    %341 = vmatpush.msra.mxu0 %v340
    %v342 = vand.u32 %v54, 4294901760
    %343 = vmatpush.msra.mxu0 %v342
    %v344 = vand.u32 %v53, 4294901760
    %345 = vmatpush.msra.mxu0 %v344
    %v346 = vand.u32 %v52, 4294901760
    %347 = vmatpush.msra.mxu0 %v346
    %v348 = vand.u32 %v51, 4294901760
    %349 = vmatpush.msra.mxu0 %v348
    %v350 = vand.u32 %v47, 4294901760
    %v351 = vsub.f32 %v47, %v350
    %v352 = vand.u32 %v351, 4294901760
    %353 = vmatmul.f32.gmra.mxu0 %v352
    %v354 = vpop.f32.mrf.mxu0
    %v355 = vadd.f32 %v301, %v354
    %v356 = vand.u32 %v48, 4294901760
    %v357 = vsub.f32 %v48, %v356
    %v358 = vand.u32 %v357, 4294901760
    %359 = vmatmul.f32.gmra.mxu0 %v358
    %v360 = vpop.f32.mrf.mxu0
    %v361 = vadd.f32 %v306, %v360
    %v362 = vand.u32 %v49, 4294901760
    %v363 = vsub.f32 %v49, %v362
    %v364 = vand.u32 %v363, 4294901760
    %365 = vmatmul.f32.gmra.mxu0 %v364
    %v366 = vpop.f32.mrf.mxu0
    %v367 = vadd.f32 %v311, %v366
    %v368 = vand.u32 %v50, 4294901760
    %v369 = vsub.f32 %v50, %v368
    %v370 = vand.u32 %v369, 4294901760
    %371 = vmatmul.f32.gmra.mxu0 %v370
    %v372 = vpop.f32.mrf.mxu0
    %v373 = vadd.f32 %v316, %v372
    %374 = vdwg.mxu0
    %v375 = vand.u32 %v66, 4294901760
    %v376 = vsub.f32 %v66, %v375
    %v377 = vand.u32 %v376, 4294901760
    %378 = vmatpush.msra.mxu0 %v377
    %v379 = vand.u32 %v65, 4294901760
    %v380 = vsub.f32 %v65, %v379
    %v381 = vand.u32 %v380, 4294901760
    %382 = vmatpush.msra.mxu0 %v381
    %v383 = vand.u32 %v64, 4294901760
    %v384 = vsub.f32 %v64, %v383
    %v385 = vand.u32 %v384, 4294901760
    %386 = vmatpush.msra.mxu0 %v385
    %v387 = vand.u32 %v63, 4294901760
    %v388 = vsub.f32 %v63, %v387
    %v389 = vand.u32 %v388, 4294901760
    %390 = vmatpush.msra.mxu0 %v389
    %v391 = vand.u32 %v62, 4294901760
    %v392 = vsub.f32 %v62, %v391
    %v393 = vand.u32 %v392, 4294901760
    %394 = vmatpush.msra.mxu0 %v393
    %v395 = vand.u32 %v61, 4294901760
    %v396 = vsub.f32 %v61, %v395
    %v397 = vand.u32 %v396, 4294901760
    %398 = vmatpush.msra.mxu0 %v397
    %v399 = vand.u32 %v60, 4294901760
    %v400 = vsub.f32 %v60, %v399
    %v401 = vand.u32 %v400, 4294901760
    %402 = vmatpush.msra.mxu0 %v401
    %v403 = vand.u32 %v59, 4294901760
    %v404 = vsub.f32 %v59, %v403
    %v405 = vand.u32 %v404, 4294901760
    %406 = vmatpush.msra.mxu0 %v405
    %v407 = vand.u32 %v58, 4294901760
    %v408 = vsub.f32 %v58, %v407
    %v409 = vand.u32 %v408, 4294901760
    %410 = vmatpush.msra.mxu0 %v409
    %v411 = vand.u32 %v57, 4294901760
    %v412 = vsub.f32 %v57, %v411
    %v413 = vand.u32 %v412, 4294901760
    %414 = vmatpush.msra.mxu0 %v413
    %v415 = vand.u32 %v56, 4294901760
    %v416 = vsub.f32 %v56, %v415
    %v417 = vand.u32 %v416, 4294901760
    %418 = vmatpush.msra.mxu0 %v417
    %v419 = vand.u32 %v55, 4294901760
    %v420 = vsub.f32 %v55, %v419
    %v421 = vand.u32 %v420, 4294901760
    %422 = vmatpush.msra.mxu0 %v421
    %v423 = vand.u32 %v54, 4294901760
    %v424 = vsub.f32 %v54, %v423
    %v425 = vand.u32 %v424, 4294901760
    %426 = vmatpush.msra.mxu0 %v425
    %v427 = vand.u32 %v53, 4294901760
    %v428 = vsub.f32 %v53, %v427
    %v429 = vand.u32 %v428, 4294901760
    %430 = vmatpush.msra.mxu0 %v429
    %v431 = vand.u32 %v52, 4294901760
    %v432 = vsub.f32 %v52, %v431
    %v433 = vand.u32 %v432, 4294901760
    %434 = vmatpush.msra.mxu0 %v433
    %v435 = vand.u32 %v51, 4294901760
    %v436 = vsub.f32 %v51, %v435
    %v437 = vand.u32 %v436, 4294901760
    %438 = vmatpush.msra.mxu0 %v437
    %v439 = vand.u32 %v47, 4294901760
    %440 = vmatmul.f32.gmra.mxu0 %v439
    %v441 = vpop.f32.mrf.mxu0
    %v442 = vadd.f32 %v355, %v441
    %v443 = vand.u32 %v48, 4294901760
    %444 = vmatmul.f32.gmra.mxu0 %v443
    %v445 = vpop.f32.mrf.mxu0
    %v446 = vadd.f32 %v361, %v445
    %v447 = vand.u32 %v49, 4294901760
    %448 = vmatmul.f32.gmra.mxu0 %v447
    %v449 = vpop.f32.mrf.mxu0
    %v450 = vadd.f32 %v367, %v449
    %v451 = vand.u32 %v50, 4294901760
    %452 = vmatmul.f32.gmra.mxu0 %v451
    %v453 = vpop.f32.mrf.mxu0
    %v454 = vadd.f32 %v373, %v453
    %455 = vdwg.mxu0
    %v456 = vand.u32 %v66, 4294901760
    %457 = vmatpush.msra.mxu0 %v456
    %v458 = vand.u32 %v65, 4294901760
    %459 = vmatpush.msra.mxu0 %v458
    %v460 = vand.u32 %v64, 4294901760
    %461 = vmatpush.msra.mxu0 %v460
    %v462 = vand.u32 %v63, 4294901760
    %463 = vmatpush.msra.mxu0 %v462
    %v464 = vand.u32 %v62, 4294901760
    %465 = vmatpush.msra.mxu0 %v464
    %v466 = vand.u32 %v61, 4294901760
    %467 = vmatpush.msra.mxu0 %v466
    %v468 = vand.u32 %v60, 4294901760
    %469 = vmatpush.msra.mxu0 %v468
    %v470 = vand.u32 %v59, 4294901760
    %471 = vmatpush.msra.mxu0 %v470
    %v472 = vand.u32 %v58, 4294901760
    %473 = vmatpush.msra.mxu0 %v472
    %v474 = vand.u32 %v57, 4294901760
    %475 = vmatpush.msra.mxu0 %v474
    %v476 = vand.u32 %v56, 4294901760
    %477 = vmatpush.msra.mxu0 %v476
    %v478 = vand.u32 %v55, 4294901760
    %479 = vmatpush.msra.mxu0 %v478
    %v480 = vand.u32 %v54, 4294901760
    %481 = vmatpush.msra.mxu0 %v480
    %v482 = vand.u32 %v53, 4294901760
    %483 = vmatpush.msra.mxu0 %v482
    %v484 = vand.u32 %v52, 4294901760
    %485 = vmatpush.msra.mxu0 %v484
    %v486 = vand.u32 %v51, 4294901760
    %487 = vmatpush.msra.mxu0 %v486
    %v488 = vand.u32 %v47, 4294901760
    %489 = vmatmul.f32.gmra.mxu0 %v488
    %v490 = vpop.f32.mrf.mxu0
    %v491 = vadd.f32 %v442, %v490
    %v492 = vand.u32 %v48, 4294901760
    %493 = vmatmul.f32.gmra.mxu0 %v492
    %v494 = vpop.f32.mrf.mxu0
    %v495 = vadd.f32 %v446, %v494
    %v496 = vand.u32 %v49, 4294901760
    %497 = vmatmul.f32.gmra.mxu0 %v496
    %v498 = vpop.f32.mrf.mxu0
    %v499 = vadd.f32 %v450, %v498
    %v500 = vand.u32 %v50, 4294901760
    %501 = vmatmul.f32.gmra.mxu0 %v500
    %v502 = vpop.f32.mrf.mxu0
    %v503 = vadd.f32 %v454, %v502
    %504 = vdwg.mxu0
    %505 = vst [vmem:[#allocation7] sm:$0xff] %v491
    %506 = vst [vmem:[#allocation7 + $0x8] sm:$0xff] %v495
    %507 = vst [vmem:[#allocation7 + $0x10] sm:$0xff] %v499
    %508 = vst [vmem:[#allocation7 + $0x18] sm:$0xff] %v503
    // Predicated region
    $region22: #{tpu_custom_call.1} parent=1 // pred_check
      _
    $region23: #{tpu_custom_call.1} parent=1 // pred_check_branch
      %510 = sbr.rel (0) target = $region25
    $region24: #{tpu_custom_call.1} parent=1 // pred_region
      %512 = vsyncadd [#allocation4], 0
      %s513 = sshll.u32 [#allocation7], 4
      %s514 = int_to_ptr.vmem [resolvable:$true] %s513
      %s515 = sshll.u32 %s3, 4
      %s516 = int_to_ptr.hbm [resolvable:$true] %s515
      %521 = dma.vmem_to_hbm [thread:$0]  %s514, 512, %s516, [#allocation4], 128, 128, 8
    $region25: #{tpu_custom_call.1} parent=1 // pred_fallthru
      _
    // Predicated region
    $region26: #{tpu_custom_call.1} parent=1 // pred_check
      _
    $region27: #{tpu_custom_call.1} parent=1 // pred_check_branch
      %523 = sbr.rel (0) target = $region29
    $region28: #{tpu_custom_call.1} parent=1 // pred_region
      %525 = dma.done [#allocation4], 512
    $region29: #{tpu_custom_call.1} parent=1 // pred_fallthru
      _
    %526 = vsyncpa [#allocation3], 1
    %527 = vsyncpa [#allocation6], 1
    %528 = vsyncpa [#allocation4], 1

</llo_original>
